<compile_context>
chip_gen: v7x
topology: tpu7x:2x2x1
jax: 0.10.0
libtpu: 0.0.40
codegen_flags: <defaults>
</compile_context>

<pallas_src>
import functools

import jax
import jax.numpy as jnp
from jax import lax
from jax.experimental import pallas as pl
from jax.experimental.pallas import tpu as pltpu


def _round_up(x, m):
    return ((x + m - 1) // m) * m


def _cdiv(a, b):
    return (a + b - 1) // b


def _gelu(h, exact):
    if exact:
        # exact erf GELU (torch.nn.GELU default), computed in f32
        hf = h.astype(jnp.float32)
        g = 0.5 * hf * (1.0 + lax.erf(hf * jnp.float32(0.7071067811865476)))
        return g.astype(h.dtype)
    # tanh-approximate GELU -> EUP slot (VALU stays free for the matmul path)
    c0 = 0.7978845608028654  # sqrt(2/pi)
    c1 = 0.044715
    return 0.5 * h * (1.0 + jnp.tanh(c0 * (h + c1 * h * h * h)))


# --------------------------------------------------------------------------
# Kernels
# --------------------------------------------------------------------------
def _mlp_kernel_single(x_ref, w1_ref, b1_ref, w2_ref, b2_ref, o_ref, *,
                       exact_gelu, ew_dtype):
    # Weights fully VMEM-resident: single reduction step, no accumulator.
    h = jnp.dot(x_ref[...], w1_ref[...], preferred_element_type=jnp.float32)
    h = h.astype(ew_dtype) + b1_ref[...]
    h = _gelu(h, exact_gelu)
    out = jnp.dot(h.astype(w2_ref.dtype), w2_ref[...],
                  preferred_element_type=jnp.float32)
    # Dropout with p=0.0 is the identity at inference -> no-op.
    # TODO(synk): training-mode dropout would need pltpu.prng_seed / prng_random_bits.
    o_ref[...] = (out + b2_ref[...]).astype(o_ref.dtype)


def _mlp_kernel_multi(x_ref, w1_ref, b1_ref, w2_ref, b2_ref, o_ref, acc_ref, *,
                      exact_gelu, ew_dtype):
    # Hidden dim tiled: grid = (row tiles, hidden slices); axis 1 is the
    # reduction ("arbitrary", last).  b2 is folded into the accumulator init.
    j = pl.program_id(1)

    @pl.when(j == 0)
    def _():
        acc_ref[...] = jnp.broadcast_to(b2_ref[...], acc_ref.shape)

    h = jnp.dot(x_ref[...], w1_ref[...], preferred_element_type=jnp.float32)
    h = h.astype(ew_dtype) + b1_ref[...]
    h = _gelu(h, exact_gelu)
    acc_ref[...] += jnp.dot(h.astype(w2_ref.dtype), w2_ref[...],
                            preferred_element_type=jnp.float32)

    @pl.when(j == pl.num_programs(1) - 1)
    def _():
        o_ref[...] = acc_ref[...].astype(o_ref.dtype)


# --------------------------------------------------------------------------
# Per-generation configuration
# --------------------------------------------------------------------------
def _chip_config():
    kind = ""
    try:
        kind = (jax.devices()[0].device_kind or "").lower()
    except Exception:
        pass
    is_v7 = "v7" in kind
    is_v5e = ("v5e" in kind) or ("v5 lite" in kind) or ("v5lite" in kind)
    # VMEM we are willing to request: v7x has 64 MiB physical per TC (leave
    # headroom for compiler scratch); v5e/v6e have 128 MiB.
    cap = (56 if is_v7 else 100) * 1024 * 1024
    try:  # clip by the actual device capacity when the query is available
        cap = min(cap, int(pltpu.get_tpu_info().vmem_capacity_bytes * 0.85))
    except Exception:
        pass
    return {
        "vmem_cap": cap,
        "two_row_tiles": is_v7,          # feed both v7x TensorCores
        "bf16_elementwise": not is_v5e,  # v5e VPU/EUP have no bf16 path
    }


# --------------------------------------------------------------------------
# Wrapper
# --------------------------------------------------------------------------
def mlp_pallas(x, w1, b1, w2, b2, *, tm=512, th=2048,
               compute_dtype=jnp.bfloat16, elementwise_dtype=None,
               exact_gelu=None, force_hidden_tile=None):
    """x:(B,N,C)  w1:(C,H)  b1:(H,)  w2:(H,Co)  b2:(Co,).  Returns (B,N,Co)."""
    B, N, C = x.shape
    H = w1.shape[1]
    Co = w2.shape[1]
    M = B * N
    cfg = _chip_config()
    vmem_cap = cfg["vmem_cap"]

    cds = jnp.dtype(compute_dtype).itemsize
    ods = jnp.dtype(x.dtype).itemsize

    if exact_gelu is None:
        # exact erf for the f32 parity path; tanh approx for the perf path
        exact_gelu = jnp.dtype(compute_dtype) == jnp.dtype(jnp.float32)
    if elementwise_dtype is None:
        elementwise_dtype = (compute_dtype if (cds == 2 and cfg["bf16_elementwise"])
                             else jnp.float32)
    ew_dtype = jnp.dtype(elementwise_dtype)
    ewds = ew_dtype.itemsize

    # lane-dense output writeback (avoid masked partial stores)
    Cop = _round_up(Co, 128)

    # ---- row tile --------------------------------------------------------
    row_align = 8 if cds >= 4 else (16 if cds == 2 else 32)
    tm = _round_up(max(row_align, min(tm, _round_up(M, row_align))), row_align)
    if cfg["two_row_tiles"] and _cdiv(M, tm) < 2 and M > row_align:
        # v7x: make sure both TensorCores get at least one row tile
        tm = max(_round_up(_cdiv(M, 2), row_align), row_align)

    def vmem_need(tm_, th_, resident):
        wbufs = 1 if resident else 2
        return (2 * tm_ * C * cds                         # x tile (double buffered)
                + 2 * tm_ * Cop * ods                     # out tile (double buffered)
                + wbufs * (C * th_ + th_ * Cop) * cds     # W1 / W2 slices
                + wbufs * th_ * ewds + 2 * Cop * 4        # biases
                + (0 if resident else tm_ * Cop * 4)      # f32 accumulator
                + tm_ * th_ * (4 + ewds))                 # fc1 / GELU intermediates

    # ---- hidden tile: keep W1/W2 VMEM-resident when they fit --------------
    if force_hidden_tile is not None:
        resident = False
        th = min(_round_up(force_hidden_tile, 128), _round_up(H, 128))
    else:
        resident = False
        tm_try = tm
        while True:
            if vmem_need(tm_try, H, True) <= vmem_cap:
                resident, tm = True, tm_try
                break
            if tm_try <= max(row_align, 128):
                break
            tm_try = max(_round_up(tm_try // 2, row_align), row_align)
        if not resident:
            th = min(_round_up(min(th, H), 128), _round_up(H, 128))
            while th > 128 and vmem_need(tm, th, False) > vmem_cap:
                th = max(_round_up(th // 2, 128), 128)
            while tm > row_align and vmem_need(tm, th, False) > vmem_cap:
                tm = max(_round_up(tm // 2, row_align), row_align)

    if resident:
        th = H
        Hp = H
    else:
        Hp = _round_up(H, th)
    Mp = _round_up(M, tm)

    # ---- host-side pad / cast ---------------------------------------------
    x2d = x.reshape(M, C).astype(compute_dtype)
    if Mp != M:
        x2d = jnp.pad(x2d, ((0, Mp - M), (0, 0)))
    w1p = w1.astype(compute_dtype)
    b1p = b1.reshape(1, H).astype(ew_dtype)
    w2p = w2.astype(compute_dtype)
    b2p = b2.reshape(1, Co).astype(jnp.float32)
    if Hp != H:
        # zero-padded hidden slices: gelu(0)=0 against zero W2 rows -> no contribution
        w1p = jnp.pad(w1p, ((0, 0), (0, Hp - H)))
        b1p = jnp.pad(b1p, ((0, 0), (0, Hp - H)))
        w2p = jnp.pad(w2p, ((0, Hp - H), (0, 0)))
    if Cop != Co:
        w2p = jnp.pad(w2p, ((0, 0), (0, Cop - Co)))
        b2p = jnp.pad(b2p, ((0, 0), (0, Cop - Co)))

    ni = Mp // tm
    nj = Hp // th

    need = vmem_need(tm, Hp if resident else th, resident)
    vmem_limit = int(min(vmem_cap, max(int(need * 1.25), 16 * 1024 * 1024)))

    wt_restream = 1 if resident else ni
    cost = pl.CostEstimate(
        flops=int(2 * Mp * (C * Hp + Hp * Cop)),
        transcendentals=int(Mp * Hp),
        bytes_accessed=int(Mp * C * cds + Mp * Cop * ods
                           + wt_restream * (C * Hp + Hp * Cop) * cds
                           + Hp * ewds + Cop * 4),
    )

    kern_single = functools.partial(_mlp_kernel_single,
                                    exact_gelu=exact_gelu, ew_dtype=ew_dtype)
    kern_multi = functools.partial(_mlp_kernel_multi,
                                   exact_gelu=exact_gelu, ew_dtype=ew_dtype)

    if resident:
        def build(pin):
            pm = dict(pipeline_mode=pl.Buffered(1)) if pin else {}
            in_specs = [
                pl.BlockSpec((tm, C), lambda i: (i, 0)),            # x row tile
                pl.BlockSpec((C, Hp), lambda i: (0, 0), **pm),      # W1 (resident)
                pl.BlockSpec((1, Hp), lambda i: (0, 0), **pm),      # b1 (resident)
                pl.BlockSpec((Hp, Cop), lambda i: (0, 0), **pm),    # W2 (resident)
                pl.BlockSpec((1, Cop), lambda i: (0, 0), **pm),     # b2 (resident)
            ]
            return pl.pallas_call(
                kern_single,
                out_shape=jax.ShapeDtypeStruct((Mp, Cop), x.dtype),
                grid_spec=pltpu.PrefetchScalarGridSpec(
                    num_scalar_prefetch=0,
                    grid=(ni,),
                    in_specs=in_specs,
                    out_specs=pl.BlockSpec((tm, Cop), lambda i: (i, 0)),
                ),
                compiler_params=pltpu.CompilerParams(
                    dimension_semantics=("parallel",),
                    vmem_limit_bytes=vmem_limit),
                cost_estimate=cost,
            )

        try:
            out2d = build(True)(x2d, w1p, b1p, w2p, b2p)
            jax.block_until_ready(out2d)
        except Exception:
            # Buffered(1) pinning unavailable -> default double buffering
            out2d = build(False)(x2d, w1p, b1p, w2p, b2p)
    else:
        def snake(i, j):
            # serpentine hidden-slice order: boundary W1/W2 slice of row tile i
            # is reused as the first slice of row tile i+1
            if ni <= 1 or nj <= 1:
                return j
            return jnp.where((i % 2) == 0, j, nj - 1 - j)

        out2d = pl.pallas_call(
            kern_multi,
            out_shape=jax.ShapeDtypeStruct((Mp, Cop), x.dtype),
            grid_spec=pltpu.PrefetchScalarGridSpec(
                num_scalar_prefetch=0,
                grid=(ni, nj),
                in_specs=[
                    pl.BlockSpec((tm, C), lambda i, j: (i, 0)),          # x row tile
                    pl.BlockSpec((C, th), lambda i, j: (0, snake(i, j))),  # W1 slice
                    pl.BlockSpec((1, th), lambda i, j: (0, snake(i, j))),  # b1 slice
                    pl.BlockSpec((th, Cop), lambda i, j: (snake(i, j), 0)),  # W2 slice
                    pl.BlockSpec((1, Cop), lambda i, j: (0, 0)),         # b2 (resident)
                ],
                out_specs=pl.BlockSpec((tm, Cop), lambda i, j: (i, 0)),
                scratch_shapes=[pltpu.VMEM((tm, Cop), jnp.float32)],
            ),
            compiler_params=pltpu.CompilerParams(
                dimension_semantics=("parallel", "arbitrary"),
                vmem_limit_bytes=vmem_limit),
            cost_estimate=cost,
        )(x2d, w1p, b1p, w2p, b2p)

    out2d = out2d[:M, :Co]
    return out2d.reshape(B, N, Co)


def mlp_reference(x, w1, b1, w2, b2):
    h = jnp.einsum("bnc,ch->bnh", x, w1) + b1
    h = 0.5 * h * (1.0 + lax.erf(h / jnp.sqrt(2.0)))
    return jnp.einsum("bnh,ho->bno", h, w2) + b2


if __name__ == "__main__":
    # Small shapes consistent with the module: tokens (B, N, C)
    B, N = 2, 8
    in_features = 32
    hidden_features = 64
    out_features = in_features  # default: out_features = in_features

    key = jax.random.PRNGKey(0)
    kx, kw1, kb1, kw2, kb2, k2 = jax.random.split(key, 6)

    x = jax.random.normal(kx, (B, N, in_features), dtype=jnp.float32)
    # deterministic synthetic parameters (nn.Linear shapes, pre-transposed)
    w1 = jax.random.normal(kw1, (in_features, hidden_features), jnp.float32) * 0.05
    b1 = jax.random.normal(kb1, (hidden_features,), jnp.float32) * 0.05
    w2 = jax.random.normal(kw2, (hidden_features, out_features), jnp.float32) * 0.05
    b2 = jax.random.normal(kb2, (out_features,), jnp.float32) * 0.05

    y_ref = mlp_reference(x, w1, b1, w2, b2)

    # 1) f32 path -- exact parity with the torch module (erf GELU, f32 math)
    y_f32 = mlp_pallas(x, w1, b1, w2, b2, compute_dtype=jnp.float32)
    jax.block_until_ready(y_f32)
    assert y_f32.shape == (B, N, out_features)
    err = float(jnp.max(jnp.abs(y_f32 - y_ref)))
    assert err < 1e-5, f"f32 max abs err {err}"

    # 2) bf16-MXU performance path (f32 accumulation, tanh GELU,
    #    bf16 elementwise on v6e/v7x); tolerance loosened for the bf16 casts.
    y_bf16 = mlp_pallas(x, w1, b1, w2, b2, compute_dtype=jnp.bfloat16)
    jax.block_until_ready(y_bf16)
    assert y_bf16.shape == (B, N, out_features)
    err = float(jnp.max(jnp.abs(y_bf16 - y_ref)))
    assert err < 2e-2, f"bf16 max abs err {err}"

    # 3) hidden-dim-tiled (multi-step reduction) path, exercising the f32
    #    accumulator, b2-folded init and serpentine hidden-slice order.
    kx2, kw3, kb3, kw4, kb4 = jax.random.split(k2, 5)
    B2, N2, C2, H2 = 2, 16, 32, 256
    x2 = jax.random.normal(kx2, (B2, N2, C2), jnp.float32)
    w3 = jax.random.normal(kw3, (C2, H2), jnp.float32) * 0.05
    b3 = jax.random.normal(kb3, (H2,), jnp.float32) * 0.05
    w4 = jax.random.normal(kw4, (H2, C2), jnp.float32) * 0.05
    b4 = jax.random.normal(kb4, (C2,), jnp.float32) * 0.05
    y2_ref = mlp_reference(x2, w3, b3, w4, b4)
    y2 = mlp_pallas(x2, w3, b3, w4, b4, compute_dtype=jnp.float32,
                    tm=16, force_hidden_tile=128)
    jax.block_until_ready(y2)
    assert y2.shape == (B2, N2, C2)
    err = float(jnp.max(jnp.abs(y2 - y2_ref)))
    assert err < 1e-4, f"tiled-path max abs err {err}"

    print("KERNEL_OK")
</pallas_src>

<mosaic_0001>
module attributes {stable_mosaic.version = 11 : i64} {
  func.func @_mlp_kernel_single(%arg0: i32, %arg1: memref<16x32xf32, #tpu.memory_space<vmem>>, %arg2: memref<32x64xf32, #tpu.memory_space<vmem>>, %arg3: memref<1x64xf32, #tpu.memory_space<vmem>>, %arg4: memref<64x128xf32, #tpu.memory_space<vmem>>, %arg5: memref<1x128xf32, #tpu.memory_space<vmem>>, %arg6: memref<16x128xf32, #tpu.memory_space<vmem>>) attributes {dimension_semantics = [#tpu.dimension_semantics<parallel>], iteration_bounds = array<i64: 1>, scalar_prefetch = 0 : i64, scratch_operands = 0 : i64, tpu.core_type = #tpu.core_type<tc>, window_params = [{transform_indices = @transform_0, window_bounds = array<i64: 16, 32>}, {pipeline_mode = #tpu.pipeline_mode<synchronous>, transform_indices = @transform_1, window_bounds = array<i64: 32, 64>}, {pipeline_mode = #tpu.pipeline_mode<synchronous>, transform_indices = @transform_2, window_bounds = array<i64: 1, 64>}, {pipeline_mode = #tpu.pipeline_mode<synchronous>, transform_indices = @transform_3, window_bounds = array<i64: 64, 128>}, {pipeline_mode = #tpu.pipeline_mode<synchronous>, transform_indices = @transform_4, window_bounds = array<i64: 1, 128>}, {transform_indices = @transform_5, window_bounds = array<i64: 16, 128>}]} {
    %c0 = arith.constant 0 : index
    %c0_0 = arith.constant 0 : index
    %0 = vector.load %arg1[%c0, %c0_0] : memref<16x32xf32, #tpu.memory_space<vmem>>, vector<16x32xf32>
    %c0_1 = arith.constant 0 : index
    %c0_2 = arith.constant 0 : index
    %1 = vector.load %arg2[%c0_1, %c0_2] : memref<32x64xf32, #tpu.memory_space<vmem>>, vector<32x64xf32>
    %cst = arith.constant dense<0.000000e+00> : vector<16x64xf32>
    %2 = tpu.matmul %0, %1, %cst {dimension_numbers = #tpu.dot_dimension_numbers<[1], [0], [0], [1], [0, 0, 1, 1], [], []>} : vector<16x32xf32>, vector<32x64xf32>, vector<16x64xf32> -> vector<16x64xf32>
    %c0_3 = arith.constant 0 : index
    %c0_4 = arith.constant 0 : index
    %3 = vector.load %arg3[%c0_3, %c0_4] : memref<1x64xf32, #tpu.memory_space<vmem>>, vector<1x64xf32>
    %4 = vector.broadcast %3 : vector<1x64xf32> to vector<16x64xf32>
    %5 = arith.addf %2, %4 : vector<16x64xf32>
    %cst_5 = arith.constant 5.000000e-01 : f32
    %6 = vector.broadcast %cst_5 : f32 to vector<16x64xf32>
    %7 = arith.mulf %6, %5 : vector<16x64xf32>
    %cst_6 = arith.constant 0.707106769 : f32
    %8 = vector.broadcast %cst_6 : f32 to vector<16x64xf32>
    %9 = arith.mulf %5, %8 : vector<16x64xf32>
    %10 = math.erf %9 : vector<16x64xf32>
    %cst_7 = arith.constant 1.000000e+00 : f32
    %11 = vector.broadcast %cst_7 : f32 to vector<16x64xf32>
    %12 = arith.addf %11, %10 : vector<16x64xf32>
    %13 = arith.mulf %7, %12 : vector<16x64xf32>
    %c0_8 = arith.constant 0 : index
    %c0_9 = arith.constant 0 : index
    %14 = vector.load %arg4[%c0_8, %c0_9] : memref<64x128xf32, #tpu.memory_space<vmem>>, vector<64x128xf32>
    %cst_10 = arith.constant dense<0.000000e+00> : vector<16x128xf32>
    %15 = tpu.matmul %13, %14, %cst_10 {dimension_numbers = #tpu.dot_dimension_numbers<[1], [0], [0], [1], [0, 0, 1, 1], [], []>} : vector<16x64xf32>, vector<64x128xf32>, vector<16x128xf32> -> vector<16x128xf32>
    %c0_11 = arith.constant 0 : index
    %c0_12 = arith.constant 0 : index
    %16 = vector.load %arg5[%c0_11, %c0_12] : memref<1x128xf32, #tpu.memory_space<vmem>>, vector<1x128xf32>
    %17 = vector.broadcast %16 : vector<1x128xf32> to vector<16x128xf32>
    %18 = arith.addf %15, %17 : vector<16x128xf32>
    %c0_13 = arith.constant 0 : index
    %c0_14 = arith.constant 0 : index
    %19 = vector.load %arg6[%c0_13, %c0_14] : memref<16x128xf32, #tpu.memory_space<vmem>>, vector<16x128xf32>
    tpu.vector_store %arg6[%c0_13, %c0_14], %18 {strides = array<i32>} : memref<16x128xf32, #tpu.memory_space<vmem>>, vector<16x128xf32>,
    return
  }
  func.func @transform_0(%arg0: i32) -> (i32, i32) {
    %c0_i32 = arith.constant 0 : i32
    %c0_i32_0 = arith.constant 0 : i32
    return %arg0, %c0_i32 : i32, i32
  }
  func.func @transform_1(%arg0: i32) -> (i32, i32) {
    %c0_i32 = arith.constant 0 : i32
    %c0_i32_0 = arith.constant 0 : i32
    %c0_i32_1 = arith.constant 0 : i32
    return %c0_i32, %c0_i32_0 : i32, i32
  }
  func.func @transform_2(%arg0: i32) -> (i32, i32) {
    %c0_i32 = arith.constant 0 : i32
    %c0_i32_0 = arith.constant 0 : i32
    %c0_i32_1 = arith.constant 0 : i32
    return %c0_i32, %c0_i32_0 : i32, i32
  }
  func.func @transform_3(%arg0: i32) -> (i32, i32) {
    %c0_i32 = arith.constant 0 : i32
    %c0_i32_0 = arith.constant 0 : i32
    %c0_i32_1 = arith.constant 0 : i32
    return %c0_i32, %c0_i32_0 : i32, i32
  }
  func.func @transform_4(%arg0: i32) -> (i32, i32) {
    %c0_i32 = arith.constant 0 : i32
    %c0_i32_0 = arith.constant 0 : i32
    %c0_i32_1 = arith.constant 0 : i32
    return %c0_i32, %c0_i32_0 : i32, i32
  }
  func.func @transform_5(%arg0: i32) -> (i32, i32) {
    %c0_i32 = arith.constant 0 : i32
    %c0_i32_0 = arith.constant 0 : i32
    return %arg0, %c0_i32 : i32, i32
  }
}

module attributes {stable_mosaic.version = 11 : i64} {
  func.func @_mlp_kernel_single(%arg0: i32, %arg1: memref<16x32xf32, #tpu.memory_space<vmem>>, %arg2: memref<32x64xf32, #tpu.memory_space<vmem>>, %arg3: memref<1x64xf32, #tpu.memory_space<vmem>>, %arg4: memref<64x128xf32, #tpu.memory_space<vmem>>, %arg5: memref<1x128xf32, #tpu.memory_space<vmem>>, %arg6: memref<16x128xf32, #tpu.memory_space<vmem>>) attributes {dimension_semantics = [#tpu.dimension_semantics<parallel>], iteration_bounds = array<i64: 1>, scalar_prefetch = 0 : i64, scratch_operands = 0 : i64, tpu.core_type = #tpu.core_type<tc>, window_params = [{transform_indices = @transform_0, window_bounds = array<i64: 16, 32>}, {pipeline_mode = #tpu.pipeline_mode<synchronous>, transform_indices = @transform_1, window_bounds = array<i64: 32, 64>}, {pipeline_mode = #tpu.pipeline_mode<synchronous>, transform_indices = @transform_2, window_bounds = array<i64: 1, 64>}, {pipeline_mode = #tpu.pipeline_mode<synchronous>, transform_indices = @transform_3, window_bounds = array<i64: 64, 128>}, {pipeline_mode = #tpu.pipeline_mode<synchronous>, transform_indices = @transform_4, window_bounds = array<i64: 1, 128>}, {transform_indices = @transform_5, window_bounds = array<i64: 16, 128>}]} {
    %c0 = arith.constant 0 : index
    %c0_0 = arith.constant 0 : index
    %0 = vector.load %arg1[%c0, %c0_0] : memref<16x32xf32, #tpu.memory_space<vmem>>, vector<16x32xf32>
    %c0_1 = arith.constant 0 : index
    %c0_2 = arith.constant 0 : index
    %1 = vector.load %arg2[%c0_1, %c0_2] : memref<32x64xf32, #tpu.memory_space<vmem>>, vector<32x64xf32>
    %cst = arith.constant dense<0.000000e+00> : vector<16x64xf32>
    %2 = tpu.matmul %0, %1, %cst {dimension_numbers = #tpu.dot_dimension_numbers<[1], [0], [0], [1], [0, 0, 1, 1], [], []>} : vector<16x32xf32>, vector<32x64xf32>, vector<16x64xf32> -> vector<16x64xf32>
    %c0_3 = arith.constant 0 : index
    %c0_4 = arith.constant 0 : index
    %3 = vector.load %arg3[%c0_3, %c0_4] : memref<1x64xf32, #tpu.memory_space<vmem>>, vector<1x64xf32>
    %4 = vector.broadcast %3 : vector<1x64xf32> to vector<16x64xf32>
    %5 = arith.addf %2, %4 : vector<16x64xf32>
    %cst_5 = arith.constant 5.000000e-01 : f32
    %6 = vector.broadcast %cst_5 : f32 to vector<16x64xf32>
    %7 = arith.mulf %6, %5 : vector<16x64xf32>
    %cst_6 = arith.constant 0.707106769 : f32
    %8 = vector.broadcast %cst_6 : f32 to vector<16x64xf32>
    %9 = arith.mulf %5, %8 : vector<16x64xf32>
    %10 = math.erf %9 : vector<16x64xf32>
    %cst_7 = arith.constant 1.000000e+00 : f32
    %11 = vector.broadcast %cst_7 : f32 to vector<16x64xf32>
    %12 = arith.addf %11, %10 : vector<16x64xf32>
    %13 = arith.mulf %7, %12 : vector<16x64xf32>
    %c0_8 = arith.constant 0 : index
    %c0_9 = arith.constant 0 : index
    %14 = vector.load %arg4[%c0_8, %c0_9] : memref<64x128xf32, #tpu.memory_space<vmem>>, vector<64x128xf32>
    %cst_10 = arith.constant dense<0.000000e+00> : vector<16x128xf32>
    %15 = tpu.matmul %13, %14, %cst_10 {dimension_numbers = #tpu.dot_dimension_numbers<[1], [0], [0], [1], [0, 0, 1, 1], [], []>} : vector<16x64xf32>, vector<64x128xf32>, vector<16x128xf32> -> vector<16x128xf32>
    %c0_11 = arith.constant 0 : index
    %c0_12 = arith.constant 0 : index
    %16 = vector.load %arg5[%c0_11, %c0_12] : memref<1x128xf32, #tpu.memory_space<vmem>>, vector<1x128xf32>
    %17 = vector.broadcast %16 : vector<1x128xf32> to vector<16x128xf32>
    %18 = arith.addf %15, %17 : vector<16x128xf32>
    %c0_13 = arith.constant 0 : index
    %c0_14 = arith.constant 0 : index
    %19 = vector.load %arg6[%c0_13, %c0_14] : memref<16x128xf32, #tpu.memory_space<vmem>>, vector<16x128xf32>
    tpu.vector_store %arg6[%c0_13, %c0_14], %18 {strides = array<i32>} : memref<16x128xf32, #tpu.memory_space<vmem>>, vector<16x128xf32>,
    return
  }
  func.func @transform_0(%arg0: i32) -> (i32, i32) {
    %c0_i32 = arith.constant 0 : i32
    %c0_i32_0 = arith.constant 0 : i32
    return %arg0, %c0_i32 : i32, i32
  }
  func.func @transform_1(%arg0: i32) -> (i32, i32) {
    %c0_i32 = arith.constant 0 : i32
    %c0_i32_0 = arith.constant 0 : i32
    %c0_i32_1 = arith.constant 0 : i32
    return %c0_i32, %c0_i32_0 : i32, i32
  }
  func.func @transform_2(%arg0: i32) -> (i32, i32) {
    %c0_i32 = arith.constant 0 : i32
    %c0_i32_0 = arith.constant 0 : i32
    %c0_i32_1 = arith.constant 0 : i32
    return %c0_i32, %c0_i32_0 : i32, i32
  }
  func.func @transform_3(%arg0: i32) -> (i32, i32) {
    %c0_i32 = arith.constant 0 : i32
    %c0_i32_0 = arith.constant 0 : i32
    %c0_i32_1 = arith.constant 0 : i32
    return %c0_i32, %c0_i32_0 : i32, i32
  }
  func.func @transform_4(%arg0: i32) -> (i32, i32) {
    %c0_i32 = arith.constant 0 : i32
    %c0_i32_0 = arith.constant 0 : i32
    %c0_i32_1 = arith.constant 0 : i32
    return %c0_i32, %c0_i32_0 : i32, i32
  }
  func.func @transform_5(%arg0: i32) -> (i32, i32) {
    %c0_i32 = arith.constant 0 : i32
    %c0_i32_0 = arith.constant 0 : i32
    return %arg0, %c0_i32 : i32, i32
  }
}

</mosaic_0001>

<llo_original>
// kernel: tpu_custom_call.1
$region0: #{tpu_custom_call.1}
  #allocation0 [shape = 'u32[]', space=smem, size = 0x4, offset = 0x4, fixed_abs, tag = 'smem constant byte address 0x4 - core index']
  #allocation1 [shape = 'u32[144,128]{1,0:T(1,128)}', space=vmem, size = 0x12000, scoped, tag = 'internal scratch']
  %s0 = inlined_call_operand.hbm [shape: f32[16,32], index: 0, kind: input, shape index: {}]
  %s1 = inlined_call_operand.hbm [shape: f32[32,64], index: 1, kind: input, shape index: {}]
  %s2 = inlined_call_operand.vmem [shape: f32[1,64], index: 2, kind: input, shape index: {}]
  %s3 = inlined_call_operand.hbm [shape: f32[64,128], index: 3, kind: input, shape index: {}]
  %s4 = inlined_call_operand.vmem [shape: f32[1,128], index: 4, kind: input, shape index: {}]
  %s5 = inlined_call_operand.hbm [shape: f32[16,128], index: 5, kind: output, shape index: {}]
  %s6 = sld [smem:[#allocation0]]
  $region42: #{tpu_custom_call.1} parent=0
    _
  %s8 = ssub.s32 1, %s6
  %s9 = scalar_select 0, %s8, %s6
  $region1: #{tpu_custom_call.1} parent=0
    #allocation2 [shape = 'u8[8192]{0}', space=vmem, size = 0x2000, scoped, tag = 'input window, operand 0, single buffered']
    #allocation3 [shape = 's32[1]{0}', space=sflag, size = 0x4, scoped, tag = 'scoped memory for tpu_custom_call.1']
    #allocation4 [shape = 's32[1]{0}', space=sflag, size = 0x4, scoped, tag = 'scoped memory for tpu_custom_call.1']
    #allocation5 [shape = 'u8[16384]{0}', space=vmem, size = 0x4000, scoped, tag = 'input window, operand 1, single buffered']
    #allocation6 [shape = 's32[1]{0}', space=sflag, size = 0x4, scoped, tag = 'scoped memory for tpu_custom_call.1']
    #allocation7 [shape = 'u8[32768]{0}', space=vmem, size = 0x8000, scoped, tag = 'input window, operand 3, single buffered']
    #allocation8 [shape = 'u8[8192]{0}', space=vmem, size = 0x2000, scoped, tag = 'output window, operand 0, single buffered']
    %10 = vsyncpa [#allocation3], 0
    %11 = vsyncpa [#allocation6], 0
    %12 = vsyncpa [#allocation4], 0
    // Predicated region
    $region2: #{tpu_custom_call.1} parent=1 // pred_check
      _
    $region3: #{tpu_custom_call.1} parent=1 // pred_check_branch
      %14 = sbr.rel (0) target = $region5
    $region4: #{tpu_custom_call.1} parent=1 // pred_region
      %s16 = ssub.s32 256, 256
      %17 = vsyncadd [#allocation3], %s16
      %s18 = sshll.u32 [#allocation2], 4
      %s19 = int_to_ptr.vmem [resolvable:$true] %s18
      %24 = dma.hbm_to_vmem [thread:$0]  %s0, 256, %s19, [#allocation3], 128, 128, 8
    $region5: #{tpu_custom_call.1} parent=1 // pred_fallthru
      _
    // Predicated region
    $region6: #{tpu_custom_call.1} parent=1 // pred_check
      _
    $region7: #{tpu_custom_call.1} parent=1 // pred_check_branch
      %26 = sbr.rel (0) target = $region9
    $region8: #{tpu_custom_call.1} parent=1 // pred_region
      %s28 = ssub.s32 512, 512
      %29 = vsyncadd [#allocation6], %s28
      %s30 = sshll.u32 [#allocation5], 4
      %s31 = int_to_ptr.vmem [resolvable:$true] %s30
      %36 = dma.hbm_to_vmem [thread:$0]  %s1, 512, %s31, [#allocation6], 128, 128, 8
    $region9: #{tpu_custom_call.1} parent=1 // pred_fallthru
      _
    // Predicated region
    $region10: #{tpu_custom_call.1} parent=1 // pred_check
      _
    $region11: #{tpu_custom_call.1} parent=1 // pred_check_branch
      %38 = sbr.rel (0) target = $region13
    $region12: #{tpu_custom_call.1} parent=1 // pred_region
      _
    $region13: #{tpu_custom_call.1} parent=1 // pred_fallthru
      _
    // Predicated region
    $region14: #{tpu_custom_call.1} parent=1 // pred_check
      _
    $region15: #{tpu_custom_call.1} parent=1 // pred_check_branch
      %40 = sbr.rel (0) target = $region17
    $region16: #{tpu_custom_call.1} parent=1 // pred_region
      %s42 = ssub.s32 1024, 1024
      %43 = vsyncadd [#allocation6], %s42
      %s44 = sshll.u32 [#allocation7], 4
      %s45 = int_to_ptr.vmem [resolvable:$true] %s44
      %50 = dma.hbm_to_vmem [thread:$0]  %s3, 1024, %s45, [#allocation6], 128, 128, 8
    $region17: #{tpu_custom_call.1} parent=1 // pred_fallthru
      _
    // Predicated region
    $region18: #{tpu_custom_call.1} parent=1 // pred_check
      _
    $region19: #{tpu_custom_call.1} parent=1 // pred_check_branch
      %52 = sbr.rel (0) target = $region21
    $region20: #{tpu_custom_call.1} parent=1 // pred_region
      _
    $region21: #{tpu_custom_call.1} parent=1 // pred_fallthru
      _
    // Predicated region
    $region22: #{tpu_custom_call.1} parent=1 // pred_check
      _
    $region23: #{tpu_custom_call.1} parent=1 // pred_check_branch
      %54 = sbr.rel (0) target = $region25
    $region24: #{tpu_custom_call.1} parent=1 // pred_region
      %55 = dma.done [#allocation3], 256
    $region25: #{tpu_custom_call.1} parent=1 // pred_fallthru
      _
    // Predicated region
    $region26: #{tpu_custom_call.1} parent=1 // pred_check
      _
    $region27: #{tpu_custom_call.1} parent=1 // pred_check_branch
      %57 = sbr.rel (0) target = $region29
    $region28: #{tpu_custom_call.1} parent=1 // pred_region
      %58 = dma.done [#allocation6], 512
    $region29: #{tpu_custom_call.1} parent=1 // pred_fallthru
      _
    // Predicated region
    $region30: #{tpu_custom_call.1} parent=1 // pred_check
      _
    $region31: #{tpu_custom_call.1} parent=1 // pred_check_branch
      %60 = sbr.rel (0) target = $region33
    $region32: #{tpu_custom_call.1} parent=1 // pred_region
      %61 = dma.done [#allocation6], 1024
    $region33: #{tpu_custom_call.1} parent=1 // pred_fallthru
      _
    %v62 = vld [vmem:[#allocation2] sm:$0xff]
    %v63 = vld [vmem:[#allocation2 + $0x8] sm:$0xff]
    %v64 = vld [vmem:[#allocation5] sm:$0xff]
    %v65 = vld [vmem:[#allocation5 + $0x8] sm:$0xff]
    %v66 = vld [vmem:[#allocation5 + $0x10] sm:$0xff]
    %v67 = vld [vmem:[#allocation5 + $0x18] sm:$0xff]
    %v68 = vld [vmem:[%s2] sm:$0x1]
    %v70 = vlaneseq
    %v71 = vshrl.u32 %v70, 7
    %v72 = vsub.s32 0, %v71
    %v73 = vrot.slane %v68, %v72
    %vm75 = vcmask 261120
    %v77 = vsel %vm75, %v62, 0
    %v80 = vsel %vm75, %v63, 0
    %82 = vmatprep.subr.mxu0 0.0
    %83 = vmatpush1.msra.mxu0 %v64
    %84 = vmatprep.subr.mxu0 0.0
    %85 = vmatpush1.msra.mxu0 %v65
    %86 = vmatprep.subr.mxu0 0.0
    %87 = vmatpush1.msra.mxu0 %v66
    %88 = vmatprep.subr.mxu0 0.0
    %89 = vmatpush1.msra.mxu0 %v67
    %90 = vmatprep.subr.mxu0 0.0
    %91 = vmatpush1.msra.mxu0 0.0
    %92 = vmatprep.subr.mxu0 0.0
    %93 = vmatpush1.msra.mxu0 0.0
    %94 = vmatprep.subr.mxu0 0.0
    %95 = vmatpush1.msra.mxu0 0.0
    %96 = vmatprep.subr.mxu0 0.0
    %97 = vmatpush1.msra.mxu0 0.0
    %98 = vmatprep.subr.mxu0 0.0
    %99 = vmatpush1.msra.mxu0 0.0
    %100 = vmatprep.subr.mxu0 0.0
    %101 = vmatpush1.msra.mxu0 0.0
    %102 = vmatprep.subr.mxu0 0.0
    %103 = vmatpush1.msra.mxu0 0.0
    %104 = vmatprep.subr.mxu0 0.0
    %105 = vmatpush1.msra.mxu0 0.0
    %106 = vmatprep.subr.mxu0 0.0
    %107 = vmatpush1.msra.mxu0 0.0
    %108 = vmatprep.subr.mxu0 0.0
    %109 = vmatpush1.msra.mxu0 0.0
    %110 = vmatprep.subr.mxu0 0.0
    %111 = vmatpush1.msra.mxu0 0.0
    %112 = vmatprep.subr.mxu0 0.0
    %113 = vmatpush1.msra.mxu0 0.0
    %114 = vmatprep.subr.mxu0 0.0
    %115 = vmatpush1.msra.mxu0 0.0
    %116 = vmatprep.subr.mxu0 0.0
    %117 = vmatpush1.msra.mxu0 0.0
    %118 = vmatprep.subr.mxu0 0.0
    %119 = vmatpush1.msra.mxu0 0.0
    %120 = vmatprep.subr.mxu0 0.0
    %121 = vmatpush1.msra.mxu0 0.0
    %122 = vmatprep.subr.mxu0 0.0
    %123 = vmatpush1.msra.mxu0 0.0
    %124 = vmatprep.subr.mxu0 0.0
    %125 = vmatpush1.msra.mxu0 0.0
    %126 = vmatprep.subr.mxu0 0.0
    %127 = vmatpush1.msra.mxu0 0.0
    %128 = vmatprep.subr.mxu0 0.0
    %129 = vmatpush1.msra.mxu0 0.0
    %130 = vmatprep.subr.mxu0 0.0
    %131 = vmatpush1.msra.mxu0 0.0
    %132 = vmatprep.subr.mxu0 0.0
    %133 = vmatpush1.msra.mxu0 0.0
    %134 = vmatprep.subr.mxu0 0.0
    %135 = vmatpush1.msra.mxu0 0.0
    %136 = vmatprep.subr.mxu0 0.0
    %137 = vmatpush1.msra.mxu0 0.0
    %138 = vmatprep.subr.mxu0 0.0
    %139 = vmatpush1.msra.mxu0 0.0
    %140 = vmatprep.subr.mxu0 0.0
    %141 = vmatpush1.msra.mxu0 0.0
    %142 = vmatprep.subr.mxu0 0.0
    %143 = vmatpush1.msra.mxu0 0.0
    %144 = vmatprep.subr.mxu0 0.0
    %145 = vmatpush1.msra.mxu0 0.0
    %146 = vmatprep.mubr.f32.mxu0 0.0
    %147 = vmatmul.mubr.f32.gmra.mrb[0].mxu0 %v77
    %v148 = vpop.f32.mrb[0].mxu0
    %v149 = vadd.f32 %v73, %v148
    %v150 = vpop.f32.mrb[0].mxu0
    %151 = vmatprep.mubr.f32.mxu0 0.0
    %152 = vmatmul.mubr.f32.gmra.mrb[0].mxu0 %v80
    %v153 = vpop.f32.mrb[0].mxu0
    %v154 = vadd.f32 %v73, %v153
    %v155 = vpop.f32.mrb[0].mxu0
    %156 = vdwg.mxu0
    %v157 = vmul.f32 %v149, 0.5
    %v158 = vmul.f32 %v154, 0.5
    %v159 = vmul.f32 %v149, 0.70710677
    %v160 = vmul.f32 %v154, 0.70710677
    %v161 = verf.f32.pop %v159
    %v162 = verf.f32.pop %v160
    %v163 = vadd.f32 %v161, 1.0
    %v164 = vadd.f32 %v162, 1.0
    %v165 = vmul.f32 %v157, %v163
    %v166 = vmul.f32 %v158, %v164
    %v167 = vld [vmem:[#allocation7] sm:$0xff]
    %v168 = vld [vmem:[#allocation7 + $0x8] sm:$0xff]
    %v169 = vld [vmem:[#allocation7 + $0x10] sm:$0xff]
    %v170 = vld [vmem:[#allocation7 + $0x18] sm:$0xff]
    %v171 = vld [vmem:[#allocation7 + $0x20] sm:$0xff]
    %v172 = vld [vmem:[#allocation7 + $0x28] sm:$0xff]
    %v173 = vld [vmem:[#allocation7 + $0x30] sm:$0xff]
    %v174 = vld [vmem:[#allocation7 + $0x38] sm:$0xff]
    %v175 = vld [vmem:[%s4] sm:$0x1]
    %v177 = vlaneseq
    %v178 = vshrl.u32 %v177, 7
    %v179 = vsub.s32 0, %v178
    %v180 = vrot.slane %v175, %v179
    %vm182 = vcmask 523264
    %v184 = vsel %vm182, %v165, 0
    %v187 = vsel %vm182, %v166, 0
    %189 = vmatprep.subr.mxu0 0.0
    %190 = vmatpush1.msra.mxu0 %v167
    %191 = vmatprep.subr.mxu0 0.0
    %192 = vmatpush1.msra.mxu0 %v168
    %193 = vmatprep.subr.mxu0 0.0
    %194 = vmatpush1.msra.mxu0 %v169
    %195 = vmatprep.subr.mxu0 0.0
    %196 = vmatpush1.msra.mxu0 %v170
    %197 = vmatprep.subr.mxu0 0.0
    %198 = vmatpush1.msra.mxu0 %v171
    %199 = vmatprep.subr.mxu0 0.0
    %200 = vmatpush1.msra.mxu0 %v172
    %201 = vmatprep.subr.mxu0 0.0
    %202 = vmatpush1.msra.mxu0 %v173
    %203 = vmatprep.subr.mxu0 0.0
    %204 = vmatpush1.msra.mxu0 %v174
    %205 = vmatprep.subr.mxu0 0.0
    %206 = vmatpush1.msra.mxu0 0.0
    %207 = vmatprep.subr.mxu0 0.0
    %208 = vmatpush1.msra.mxu0 0.0
    %209 = vmatprep.subr.mxu0 0.0
    %210 = vmatpush1.msra.mxu0 0.0
    %211 = vmatprep.subr.mxu0 0.0
    %212 = vmatpush1.msra.mxu0 0.0
    %213 = vmatprep.subr.mxu0 0.0
    %214 = vmatpush1.msra.mxu0 0.0
    %215 = vmatprep.subr.mxu0 0.0
    %216 = vmatpush1.msra.mxu0 0.0
    %217 = vmatprep.subr.mxu0 0.0
    %218 = vmatpush1.msra.mxu0 0.0
    %219 = vmatprep.subr.mxu0 0.0
    %220 = vmatpush1.msra.mxu0 0.0
    %221 = vmatprep.subr.mxu0 0.0
    %222 = vmatpush1.msra.mxu0 0.0
    %223 = vmatprep.subr.mxu0 0.0
    %224 = vmatpush1.msra.mxu0 0.0
    %225 = vmatprep.subr.mxu0 0.0
    %226 = vmatpush1.msra.mxu0 0.0
    %227 = vmatprep.subr.mxu0 0.0
    %228 = vmatpush1.msra.mxu0 0.0
    %229 = vmatprep.subr.mxu0 0.0
    %230 = vmatpush1.msra.mxu0 0.0
    %231 = vmatprep.subr.mxu0 0.0
    %232 = vmatpush1.msra.mxu0 0.0
    %233 = vmatprep.subr.mxu0 0.0
    %234 = vmatpush1.msra.mxu0 0.0
    %235 = vmatprep.subr.mxu0 0.0
    %236 = vmatpush1.msra.mxu0 0.0
    %237 = vmatprep.subr.mxu0 0.0
    %238 = vmatpush1.msra.mxu0 0.0
    %239 = vmatprep.subr.mxu0 0.0
    %240 = vmatpush1.msra.mxu0 0.0
    %241 = vmatprep.subr.mxu0 0.0
    %242 = vmatpush1.msra.mxu0 0.0
    %243 = vmatprep.subr.mxu0 0.0
    %244 = vmatpush1.msra.mxu0 0.0
    %245 = vmatprep.subr.mxu0 0.0
    %246 = vmatpush1.msra.mxu0 0.0
    %247 = vmatprep.subr.mxu0 0.0
    %248 = vmatpush1.msra.mxu0 0.0
    %249 = vmatprep.subr.mxu0 0.0
    %250 = vmatpush1.msra.mxu0 0.0
    %251 = vmatprep.subr.mxu0 0.0
    %252 = vmatpush1.msra.mxu0 0.0
    %253 = vmatprep.mubr.f32.mxu0 0.0
    %254 = vmatmul.mubr.f32.gmra.mrb[0].mxu0 %v184
    %v255 = vpop.f32.mrb[0].mxu0
    %v256 = vadd.f32 %v180, %v255
    %v257 = vpop.f32.mrb[0].mxu0
    %258 = vmatprep.mubr.f32.mxu0 0.0
    %259 = vmatmul.mubr.f32.gmra.mrb[0].mxu0 %v187
    %v260 = vpop.f32.mrb[0].mxu0
    %v261 = vadd.f32 %v180, %v260
    %v262 = vpop.f32.mrb[0].mxu0
    %263 = vdwg.mxu0
    %264 = vst [vmem:[#allocation8] sm:$0xff] %v256
    %265 = vst [vmem:[#allocation8 + $0x8] sm:$0xff] %v261
    // Predicated region
    $region34: #{tpu_custom_call.1} parent=1 // pred_check
      _
    $region35: #{tpu_custom_call.1} parent=1 // pred_check_branch
      %267 = sbr.rel (0) target = $region37
    $region36: #{tpu_custom_call.1} parent=1 // pred_region
      %s269 = ssub.s32 256, 256
      %270 = vsyncadd [#allocation4], %s269
      %s271 = sshll.u32 [#allocation8], 4
      %s272 = int_to_ptr.vmem [resolvable:$true] %s271
      %277 = dma.vmem_to_hbm [thread:$0]  %s272, 256, %s5, [#allocation4], 128, 128, 8
    $region37: #{tpu_custom_call.1} parent=1 // pred_fallthru
      _
    // Predicated region
    $region38: #{tpu_custom_call.1} parent=1 // pred_check
      _
    $region39: #{tpu_custom_call.1} parent=1 // pred_check_branch
      %279 = sbr.rel (0) target = $region41
    $region40: #{tpu_custom_call.1} parent=1 // pred_region
      %280 = dma.done [#allocation4], 256
    $region41: #{tpu_custom_call.1} parent=1 // pred_fallthru
      _
    %281 = vsyncpa [#allocation3], 1
    %282 = vsyncpa [#allocation6], 1
    %283 = vsyncpa [#allocation4], 1

// kernel: tpu_custom_call.1
$region0: #{tpu_custom_call.1}
  #allocation0 [shape = 'u32[]', space=smem, size = 0x4, offset = 0x4, fixed_abs, tag = 'smem constant byte address 0x4 - core index']
  #allocation1 [shape = 'u32[144,128]{1,0:T(1,128)}', space=vmem, size = 0x12000, scoped, tag = 'internal scratch']
  %s0 = inlined_call_operand.hbm [shape: f32[16,32], index: 0, kind: input, shape index: {}]
  %s1 = inlined_call_operand.hbm [shape: f32[32,64], index: 1, kind: input, shape index: {}]
  %s2 = inlined_call_operand.vmem [shape: f32[1,64], index: 2, kind: input, shape index: {}]
  %s3 = inlined_call_operand.hbm [shape: f32[64,128], index: 3, kind: input, shape index: {}]
  %s4 = inlined_call_operand.vmem [shape: f32[1,128], index: 4, kind: input, shape index: {}]
  %s5 = inlined_call_operand.hbm [shape: f32[16,128], index: 5, kind: output, shape index: {}]
  %s6 = sld [smem:[#allocation0]]
  $region42: #{tpu_custom_call.1} parent=0
    _
  %s8 = ssub.s32 1, %s6
  %s9 = scalar_select 0, %s8, %s6
  $region1: #{tpu_custom_call.1} parent=0
    #allocation2 [shape = 'u8[8192]{0}', space=vmem, size = 0x2000, scoped, tag = 'input window, operand 0, single buffered']
    #allocation3 [shape = 's32[1]{0}', space=sflag, size = 0x4, scoped, tag = 'scoped memory for tpu_custom_call.1']
    #allocation4 [shape = 's32[1]{0}', space=sflag, size = 0x4, scoped, tag = 'scoped memory for tpu_custom_call.1']
    #allocation5 [shape = 'u8[16384]{0}', space=vmem, size = 0x4000, scoped, tag = 'input window, operand 1, single buffered']
    #allocation6 [shape = 's32[1]{0}', space=sflag, size = 0x4, scoped, tag = 'scoped memory for tpu_custom_call.1']
    #allocation7 [shape = 'u8[32768]{0}', space=vmem, size = 0x8000, scoped, tag = 'input window, operand 3, single buffered']
    #allocation8 [shape = 'u8[8192]{0}', space=vmem, size = 0x2000, scoped, tag = 'output window, operand 0, single buffered']
    %10 = vsyncpa [#allocation3], 0
    %11 = vsyncpa [#allocation6], 0
    %12 = vsyncpa [#allocation4], 0
    // Predicated region
    $region2: #{tpu_custom_call.1} parent=1 // pred_check
      _
    $region3: #{tpu_custom_call.1} parent=1 // pred_check_branch
      %14 = sbr.rel (0) target = $region5
    $region4: #{tpu_custom_call.1} parent=1 // pred_region
      %s16 = ssub.s32 256, 256
      %17 = vsyncadd [#allocation3], %s16
      %s18 = sshll.u32 [#allocation2], 4
      %s19 = int_to_ptr.vmem [resolvable:$true] %s18
      %24 = dma.hbm_to_vmem [thread:$0]  %s0, 256, %s19, [#allocation3], 128, 128, 8
    $region5: #{tpu_custom_call.1} parent=1 // pred_fallthru
      _
    // Predicated region
    $region6: #{tpu_custom_call.1} parent=1 // pred_check
      _
    $region7: #{tpu_custom_call.1} parent=1 // pred_check_branch
      %26 = sbr.rel (0) target = $region9
    $region8: #{tpu_custom_call.1} parent=1 // pred_region
      %s28 = ssub.s32 512, 512
      %29 = vsyncadd [#allocation6], %s28
      %s30 = sshll.u32 [#allocation5], 4
      %s31 = int_to_ptr.vmem [resolvable:$true] %s30
      %36 = dma.hbm_to_vmem [thread:$0]  %s1, 512, %s31, [#allocation6], 128, 128, 8
    $region9: #{tpu_custom_call.1} parent=1 // pred_fallthru
      _
    // Predicated region
    $region10: #{tpu_custom_call.1} parent=1 // pred_check
      _
    $region11: #{tpu_custom_call.1} parent=1 // pred_check_branch
      %38 = sbr.rel (0) target = $region13
    $region12: #{tpu_custom_call.1} parent=1 // pred_region
      _
    $region13: #{tpu_custom_call.1} parent=1 // pred_fallthru
      _
    // Predicated region
    $region14: #{tpu_custom_call.1} parent=1 // pred_check
      _
    $region15: #{tpu_custom_call.1} parent=1 // pred_check_branch
      %40 = sbr.rel (0) target = $region17
    $region16: #{tpu_custom_call.1} parent=1 // pred_region
      %s42 = ssub.s32 1024, 1024
      %43 = vsyncadd [#allocation6], %s42
      %s44 = sshll.u32 [#allocation7], 4
      %s45 = int_to_ptr.vmem [resolvable:$true] %s44
      %50 = dma.hbm_to_vmem [thread:$0]  %s3, 1024, %s45, [#allocation6], 128, 128, 8
    $region17: #{tpu_custom_call.1} parent=1 // pred_fallthru
      _
    // Predicated region
    $region18: #{tpu_custom_call.1} parent=1 // pred_check
      _
    $region19: #{tpu_custom_call.1} parent=1 // pred_check_branch
      %52 = sbr.rel (0) target = $region21
    $region20: #{tpu_custom_call.1} parent=1 // pred_region
      _
    $region21: #{tpu_custom_call.1} parent=1 // pred_fallthru
      _
    // Predicated region
    $region22: #{tpu_custom_call.1} parent=1 // pred_check
      _
    $region23: #{tpu_custom_call.1} parent=1 // pred_check_branch
      %54 = sbr.rel (0) target = $region25
    $region24: #{tpu_custom_call.1} parent=1 // pred_region
      %55 = dma.done [#allocation3], 256
    $region25: #{tpu_custom_call.1} parent=1 // pred_fallthru
      _
    // Predicated region
    $region26: #{tpu_custom_call.1} parent=1 // pred_check
      _
    $region27: #{tpu_custom_call.1} parent=1 // pred_check_branch
      %57 = sbr.rel (0) target = $region29
    $region28: #{tpu_custom_call.1} parent=1 // pred_region
      %58 = dma.done [#allocation6], 512
    $region29: #{tpu_custom_call.1} parent=1 // pred_fallthru
      _
    // Predicated region
    $region30: #{tpu_custom_call.1} parent=1 // pred_check
      _
    $region31: #{tpu_custom_call.1} parent=1 // pred_check_branch
      %60 = sbr.rel (0) target = $region33
    $region32: #{tpu_custom_call.1} parent=1 // pred_region
      %61 = dma.done [#allocation6], 1024
    $region33: #{tpu_custom_call.1} parent=1 // pred_fallthru
      _
    %v62 = vld [vmem:[#allocation2] sm:$0xff]
    %v63 = vld [vmem:[#allocation2 + $0x8] sm:$0xff]
    %v64 = vld [vmem:[#allocation5] sm:$0xff]
    %v65 = vld [vmem:[#allocation5 + $0x8] sm:$0xff]
    %v66 = vld [vmem:[#allocation5 + $0x10] sm:$0xff]
    %v67 = vld [vmem:[#allocation5 + $0x18] sm:$0xff]
    %v68 = vld [vmem:[%s2] sm:$0x1]
    %v70 = vlaneseq
    %v71 = vshrl.u32 %v70, 7
    %v72 = vsub.s32 0, %v71
    %v73 = vrot.slane %v68, %v72
    %vm75 = vcmask 261120
    %v77 = vsel %vm75, %v62, 0
    %v80 = vsel %vm75, %v63, 0
    %82 = vmatprep.subr.mxu0 0.0
    %83 = vmatpush1.msra.mxu0 %v64
    %84 = vmatprep.subr.mxu0 0.0
    %85 = vmatpush1.msra.mxu0 %v65
    %86 = vmatprep.subr.mxu0 0.0
    %87 = vmatpush1.msra.mxu0 %v66
    %88 = vmatprep.subr.mxu0 0.0
    %89 = vmatpush1.msra.mxu0 %v67
    %90 = vmatprep.subr.mxu0 0.0
    %91 = vmatpush1.msra.mxu0 0.0
    %92 = vmatprep.subr.mxu0 0.0
    %93 = vmatpush1.msra.mxu0 0.0
    %94 = vmatprep.subr.mxu0 0.0
    %95 = vmatpush1.msra.mxu0 0.0
    %96 = vmatprep.subr.mxu0 0.0
    %97 = vmatpush1.msra.mxu0 0.0
    %98 = vmatprep.subr.mxu0 0.0
    %99 = vmatpush1.msra.mxu0 0.0
    %100 = vmatprep.subr.mxu0 0.0
    %101 = vmatpush1.msra.mxu0 0.0
    %102 = vmatprep.subr.mxu0 0.0
    %103 = vmatpush1.msra.mxu0 0.0
    %104 = vmatprep.subr.mxu0 0.0
    %105 = vmatpush1.msra.mxu0 0.0
    %106 = vmatprep.subr.mxu0 0.0
    %107 = vmatpush1.msra.mxu0 0.0
    %108 = vmatprep.subr.mxu0 0.0
    %109 = vmatpush1.msra.mxu0 0.0
    %110 = vmatprep.subr.mxu0 0.0
    %111 = vmatpush1.msra.mxu0 0.0
    %112 = vmatprep.subr.mxu0 0.0
    %113 = vmatpush1.msra.mxu0 0.0
    %114 = vmatprep.subr.mxu0 0.0
    %115 = vmatpush1.msra.mxu0 0.0
    %116 = vmatprep.subr.mxu0 0.0
    %117 = vmatpush1.msra.mxu0 0.0
    %118 = vmatprep.subr.mxu0 0.0
    %119 = vmatpush1.msra.mxu0 0.0
    %120 = vmatprep.subr.mxu0 0.0
    %121 = vmatpush1.msra.mxu0 0.0
    %122 = vmatprep.subr.mxu0 0.0
    %123 = vmatpush1.msra.mxu0 0.0
    %124 = vmatprep.subr.mxu0 0.0
    %125 = vmatpush1.msra.mxu0 0.0
    %126 = vmatprep.subr.mxu0 0.0
    %127 = vmatpush1.msra.mxu0 0.0
    %128 = vmatprep.subr.mxu0 0.0
    %129 = vmatpush1.msra.mxu0 0.0
    %130 = vmatprep.subr.mxu0 0.0
    %131 = vmatpush1.msra.mxu0 0.0
    %132 = vmatprep.subr.mxu0 0.0
    %133 = vmatpush1.msra.mxu0 0.0
    %134 = vmatprep.subr.mxu0 0.0
    %135 = vmatpush1.msra.mxu0 0.0
    %136 = vmatprep.subr.mxu0 0.0
    %137 = vmatpush1.msra.mxu0 0.0
    %138 = vmatprep.subr.mxu0 0.0
    %139 = vmatpush1.msra.mxu0 0.0
    %140 = vmatprep.subr.mxu0 0.0
    %141 = vmatpush1.msra.mxu0 0.0
    %142 = vmatprep.subr.mxu0 0.0
    %143 = vmatpush1.msra.mxu0 0.0
    %144 = vmatprep.subr.mxu0 0.0
    %145 = vmatpush1.msra.mxu0 0.0
    %146 = vmatprep.mubr.f32.mxu0 0.0
    %147 = vmatmul.mubr.f32.gmra.mrb[0].mxu0 %v77
    %v148 = vpop.f32.mrb[0].mxu0
    %v149 = vadd.f32 %v73, %v148
    %v150 = vpop.f32.mrb[0].mxu0
    %151 = vmatprep.mubr.f32.mxu0 0.0
    %152 = vmatmul.mubr.f32.gmra.mrb[0].mxu0 %v80
    %v153 = vpop.f32.mrb[0].mxu0
    %v154 = vadd.f32 %v73, %v153
    %v155 = vpop.f32.mrb[0].mxu0
    %156 = vdwg.mxu0
    %v157 = vmul.f32 %v149, 0.5
    %v158 = vmul.f32 %v154, 0.5
    %v159 = vmul.f32 %v149, 0.70710677
    %v160 = vmul.f32 %v154, 0.70710677
    %v161 = verf.f32.pop %v159
    %v162 = verf.f32.pop %v160
    %v163 = vadd.f32 %v161, 1.0
    %v164 = vadd.f32 %v162, 1.0
    %v165 = vmul.f32 %v157, %v163
    %v166 = vmul.f32 %v158, %v164
    %v167 = vld [vmem:[#allocation7] sm:$0xff]
    %v168 = vld [vmem:[#allocation7 + $0x8] sm:$0xff]
    %v169 = vld [vmem:[#allocation7 + $0x10] sm:$0xff]
    %v170 = vld [vmem:[#allocation7 + $0x18] sm:$0xff]
    %v171 = vld [vmem:[#allocation7 + $0x20] sm:$0xff]
    %v172 = vld [vmem:[#allocation7 + $0x28] sm:$0xff]
    %v173 = vld [vmem:[#allocation7 + $0x30] sm:$0xff]
    %v174 = vld [vmem:[#allocation7 + $0x38] sm:$0xff]
    %v175 = vld [vmem:[%s4] sm:$0x1]
    %v177 = vlaneseq
    %v178 = vshrl.u32 %v177, 7
    %v179 = vsub.s32 0, %v178
    %v180 = vrot.slane %v175, %v179
    %vm182 = vcmask 523264
    %v184 = vsel %vm182, %v165, 0
    %v187 = vsel %vm182, %v166, 0
    %189 = vmatprep.subr.mxu0 0.0
    %190 = vmatpush1.msra.mxu0 %v167
    %191 = vmatprep.subr.mxu0 0.0
    %192 = vmatpush1.msra.mxu0 %v168
    %193 = vmatprep.subr.mxu0 0.0
    %194 = vmatpush1.msra.mxu0 %v169
    %195 = vmatprep.subr.mxu0 0.0
    %196 = vmatpush1.msra.mxu0 %v170
    %197 = vmatprep.subr.mxu0 0.0
    %198 = vmatpush1.msra.mxu0 %v171
    %199 = vmatprep.subr.mxu0 0.0
    %200 = vmatpush1.msra.mxu0 %v172
    %201 = vmatprep.subr.mxu0 0.0
    %202 = vmatpush1.msra.mxu0 %v173
    %203 = vmatprep.subr.mxu0 0.0
    %204 = vmatpush1.msra.mxu0 %v174
    %205 = vmatprep.subr.mxu0 0.0
    %206 = vmatpush1.msra.mxu0 0.0
    %207 = vmatprep.subr.mxu0 0.0
    %208 = vmatpush1.msra.mxu0 0.0
    %209 = vmatprep.subr.mxu0 0.0
    %210 = vmatpush1.msra.mxu0 0.0
    %211 = vmatprep.subr.mxu0 0.0
    %212 = vmatpush1.msra.mxu0 0.0
    %213 = vmatprep.subr.mxu0 0.0
    %214 = vmatpush1.msra.mxu0 0.0
    %215 = vmatprep.subr.mxu0 0.0
    %216 = vmatpush1.msra.mxu0 0.0
    %217 = vmatprep.subr.mxu0 0.0
    %218 = vmatpush1.msra.mxu0 0.0
    %219 = vmatprep.subr.mxu0 0.0
    %220 = vmatpush1.msra.mxu0 0.0
    %221 = vmatprep.subr.mxu0 0.0
    %222 = vmatpush1.msra.mxu0 0.0
    %223 = vmatprep.subr.mxu0 0.0
    %224 = vmatpush1.msra.mxu0 0.0
    %225 = vmatprep.subr.mxu0 0.0
    %226 = vmatpush1.msra.mxu0 0.0
    %227 = vmatprep.subr.mxu0 0.0
    %228 = vmatpush1.msra.mxu0 0.0
    %229 = vmatprep.subr.mxu0 0.0
    %230 = vmatpush1.msra.mxu0 0.0
    %231 = vmatprep.subr.mxu0 0.0
    %232 = vmatpush1.msra.mxu0 0.0
    %233 = vmatprep.subr.mxu0 0.0
    %234 = vmatpush1.msra.mxu0 0.0
    %235 = vmatprep.subr.mxu0 0.0
    %236 = vmatpush1.msra.mxu0 0.0
    %237 = vmatprep.subr.mxu0 0.0
    %238 = vmatpush1.msra.mxu0 0.0
    %239 = vmatprep.subr.mxu0 0.0
    %240 = vmatpush1.msra.mxu0 0.0
    %241 = vmatprep.subr.mxu0 0.0
    %242 = vmatpush1.msra.mxu0 0.0
    %243 = vmatprep.subr.mxu0 0.0
    %244 = vmatpush1.msra.mxu0 0.0
    %245 = vmatprep.subr.mxu0 0.0
    %246 = vmatpush1.msra.mxu0 0.0
    %247 = vmatprep.subr.mxu0 0.0
    %248 = vmatpush1.msra.mxu0 0.0
    %249 = vmatprep.subr.mxu0 0.0
    %250 = vmatpush1.msra.mxu0 0.0
    %251 = vmatprep.subr.mxu0 0.0
    %252 = vmatpush1.msra.mxu0 0.0
    %253 = vmatprep.mubr.f32.mxu0 0.0
    %254 = vmatmul.mubr.f32.gmra.mrb[0].mxu0 %v184
    %v255 = vpop.f32.mrb[0].mxu0
    %v256 = vadd.f32 %v180, %v255
    %v257 = vpop.f32.mrb[0].mxu0
    %258 = vmatprep.mubr.f32.mxu0 0.0
    %259 = vmatmul.mubr.f32.gmra.mrb[0].mxu0 %v187
    %v260 = vpop.f32.mrb[0].mxu0
    %v261 = vadd.f32 %v180, %v260
    %v262 = vpop.f32.mrb[0].mxu0
    %263 = vdwg.mxu0
    %264 = vst [vmem:[#allocation8] sm:$0xff] %v256
    %265 = vst [vmem:[#allocation8 + $0x8] sm:$0xff] %v261
    // Predicated region
    $region34: #{tpu_custom_call.1} parent=1 // pred_check
      _
    $region35: #{tpu_custom_call.1} parent=1 // pred_check_branch
      %267 = sbr.rel (0) target = $region37
    $region36: #{tpu_custom_call.1} parent=1 // pred_region
      %s269 = ssub.s32 256, 256
      %270 = vsyncadd [#allocation4], %s269
      %s271 = sshll.u32 [#allocation8], 4
      %s272 = int_to_ptr.vmem [resolvable:$true] %s271
      %277 = dma.vmem_to_hbm [thread:$0]  %s272, 256, %s5, [#allocation4], 128, 128, 8
    $region37: #{tpu_custom_call.1} parent=1 // pred_fallthru
      _
    // Predicated region
    $region38: #{tpu_custom_call.1} parent=1 // pred_check
      _
    $region39: #{tpu_custom_call.1} parent=1 // pred_check_branch
      %279 = sbr.rel (0) target = $region41
    $region40: #{tpu_custom_call.1} parent=1 // pred_region
      %280 = dma.done [#allocation4], 256
    $region41: #{tpu_custom_call.1} parent=1 // pred_fallthru
      _
    %281 = vsyncpa [#allocation3], 1
    %282 = vsyncpa [#allocation6], 1
    %283 = vsyncpa [#allocation4], 1

</llo_original>
